<compile_context>
chip_gen: v7x
topology: tpu7x:2x2x1
jax: 0.10.0
libtpu: 0.0.40
codegen_flags: <defaults>
</compile_context>

<pallas_src>
import jax
import jax.numpy as jnp
from jax.experimental import pallas as pl
from jax.experimental.pallas import tpu as pltpu

_LANES = 128
_MAX_BLOCK_ROWS = 512  # 512*128*4B = 256 KiB/tile/input -> 1.5 MiB with 3 inputs x2 bufs


def _l1_sum_kernel(yt_ref, yp_ref, w_ref, out_ref, acc_ref):
    """Accumulate sum(|y_true - y_pred| * weights) over the inner (reduction) axis."""
    k = pl.program_id(1)

    @pl.when(k == 0)
    def _init():
        acc_ref[...] = jnp.zeros_like(acc_ref)

    # Cast after the load (inputs arrive in their original dtype).
    yt = yt_ref[...].astype(jnp.float32)
    yp = yp_ref[...].astype(jnp.float32)
    w = w_ref[...].astype(jnp.float32)

    # Element-wise accumulation only (VPU); the cross-lane reduction is deferred.
    acc_ref[...] += jnp.abs(yt - yp) * w

    @pl.when(k == pl.num_programs(1) - 1)
    def _finalize():
        out_ref[...] = jnp.sum(acc_ref[...]).reshape(1, 1)


def _round_up(x, m):
    return -(-x // m) * m


def l1_loss(y_true, y_pred, weights, *, weight=1.0, top_k_percent_pixels=1.0):
    """Pallas TPU implementation of L1Loss.forward (rank-3 inputs, top_k == 1.0).

    Returns a scalar float32: mean(|y_true - y_pred| * weights) * weight.
    """
    if top_k_percent_pixels < 0.0 or top_k_percent_pixels > 1.0:
        raise ValueError(
            'The top-k percentage parameter must lie within 0.0 and 1.0, '
            'but %f was given' % top_k_percent_pixels)
    if top_k_percent_pixels != 1.0:
        # TODO(synk): torch.topk per-sample selection has no clean Pallas equivalent here.
        raise NotImplementedError('Only top_k_percent_pixels == 1.0 is supported.')
    if y_pred.ndim != 3:
        # TODO(synk): rank-4 path (channel mean before weighting) not implemented in-kernel.
        raise NotImplementedError('Only rank-3 [batch, height, width] inputs supported.')
    assert y_true.shape == y_pred.shape

    weights = jnp.broadcast_to(weights, y_true.shape)

    total = int(y_true.size)                       # true element count (B*H*W)
    rows = -(-total // _LANES)                     # ceil-div

    block_rows = _MAX_BLOCK_ROWS
    if rows < block_rows:
        block_rows = max(8, _round_up(rows, 8))    # multiple of 8 sublanes

    tiles = -(-rows // block_rows)
    num_parallel = 2 if tiles >= 2 else 1          # shard across v7x's 2 TCs; free on v5e/v6e
    tiles = _round_up(tiles, num_parallel)
    inner = tiles // num_parallel
    padded_rows = tiles * block_rows
    padded_total = padded_rows * _LANES

    def _prep(x):
        # Flatten to lane-dense (rows, 128); zero padding contributes |0-0|*0 == 0.
        flat = x.reshape(-1)
        pad = padded_total - total
        if pad:
            flat = jnp.pad(flat, (0, pad))
        return flat.reshape(padded_rows, _LANES)

    yt2 = _prep(y_true)
    yp2 = _prep(y_pred)
    w2 = _prep(weights)

    in_spec = pl.BlockSpec((block_rows, _LANES), lambda p, k: (p * inner + k, 0))
    out_spec = pl.BlockSpec((1, 1), lambda p, k: (p, 0))

    partials = pl.pallas_call(
        _l1_sum_kernel,
        out_shape=jax.ShapeDtypeStruct((num_parallel, 1), jnp.float32),
        grid_spec=pltpu.PrefetchScalarGridSpec(
            num_scalar_prefetch=0,
            grid=(num_parallel, inner),
            in_specs=[in_spec, in_spec, in_spec],
            out_specs=out_spec,
            scratch_shapes=[pltpu.VMEM((block_rows, _LANES), jnp.float32)],
        ),
        compiler_params=pltpu.CompilerParams(
            dimension_semantics=("parallel", "arbitrary")),
    )(yt2, yp2, w2)

    # Final tiny combine: sum the per-core partials, divide by the true element
    # count, apply the loss weight (both compile-time Python scalars).
    return jnp.sum(partials) * jnp.float32(weight / total)


def _reference(y_true, y_pred, weights, weight):
    """Pure-JAX reference mirroring the PyTorch module (top_k == 1.0, rank-3)."""
    per_pixel = jnp.abs(y_true - y_pred) * weights
    return jnp.mean(per_pixel) * jnp.float32(weight)


if __name__ == "__main__":
    B, H, W = 2, 16, 16
    loss_weight = 1.0

    key = jax.random.PRNGKey(0)
    k1, k2, k3 = jax.random.split(key, 3)

    y_true = jax.random.uniform(k1, (B, H, W), jnp.float32, 0.5, 2.0)
    y_pred = y_true + 0.1 * jax.random.normal(k2, (B, H, W), jnp.float32)
    weights = jax.random.uniform(k3, (B, H, W), jnp.float32, 0.0, 1.0)

    loss = l1_loss(y_true, y_pred, weights,
                   weight=loss_weight, top_k_percent_pixels=1.0)
    loss = jax.block_until_ready(loss)

    ref = _reference(y_true, y_pred, weights, loss_weight)
    assert loss.shape == ()
    assert jnp.allclose(loss, ref, atol=1e-5, rtol=1e-5), (loss, ref)

    print("KERNEL_OK")
</pallas_src>

<mosaic_0001>
module attributes {stable_mosaic.version = 11 : i64} {
  func.func @_l1_sum_kernel(%arg0: i32, %arg1: i32, %arg2: memref<8x128xf32, #tpu.memory_space<vmem>>, %arg3: memref<8x128xf32, #tpu.memory_space<vmem>>, %arg4: memref<8x128xf32, #tpu.memory_space<vmem>>, %arg5: memref<1x1xf32, #tpu.memory_space<vmem>>, %arg6: memref<8x128xf32, #tpu.memory_space<vmem>>) attributes {dimension_semantics = [#tpu.dimension_semantics<parallel>, #tpu.dimension_semantics<arbitrary>], iteration_bounds = array<i64: 1, 1>, scalar_prefetch = 0 : i64, scratch_operands = 1 : i64, tpu.core_type = #tpu.core_type<tc>, window_params = [{transform_indices = @transform_0, window_bounds = array<i64: 8, 128>}, {transform_indices = @transform_1, window_bounds = array<i64: 8, 128>}, {transform_indices = @transform_2, window_bounds = array<i64: 8, 128>}, {transform_indices = @transform_3, window_bounds = array<i64: 1, 1>}]} {
    %c0_i32 = arith.constant 0 : i32
    %0 = arith.cmpi eq, %arg1, %c0_i32 : i32
    %1 = arith.extui %0 : i1 to i32
    %c0_i32_0 = arith.constant 0 : i32
    %2 = arith.cmpi ne, %1, %c0_i32_0 : i32
    scf.if %2 {
      %cst = arith.constant 0.000000e+00 : f32
      %15 = vector.broadcast %cst : f32 to vector<8x128xf32>
      %c0_12 = arith.constant 0 : index
      %c0_13 = arith.constant 0 : index
      %16 = vector.load %arg6[%c0_12, %c0_13] : memref<8x128xf32, #tpu.memory_space<vmem>>, vector<8x128xf32>
      tpu.vector_store %arg6[%c0_12, %c0_13], %15 {strides = array<i32>} : memref<8x128xf32, #tpu.memory_space<vmem>>, vector<8x128xf32>,
    } else {
    }
    %c0 = arith.constant 0 : index
    %c0_1 = arith.constant 0 : index
    %3 = vector.load %arg2[%c0, %c0_1] : memref<8x128xf32, #tpu.memory_space<vmem>>, vector<8x128xf32>
    %c0_2 = arith.constant 0 : index
    %c0_3 = arith.constant 0 : index
    %4 = vector.load %arg3[%c0_2, %c0_3] : memref<8x128xf32, #tpu.memory_space<vmem>>, vector<8x128xf32>
    %c0_4 = arith.constant 0 : index
    %c0_5 = arith.constant 0 : index
    %5 = vector.load %arg4[%c0_4, %c0_5] : memref<8x128xf32, #tpu.memory_space<vmem>>, vector<8x128xf32>
    %c0_6 = arith.constant 0 : index
    %c0_7 = arith.constant 0 : index
    %6 = vector.load %arg6[%c0_6, %c0_7] : memref<8x128xf32, #tpu.memory_space<vmem>>, vector<8x128xf32>
    %7 = arith.subf %3, %4 : vector<8x128xf32>
    %8 = math.absf %7 : vector<8x128xf32>
    %9 = arith.mulf %8, %5 : vector<8x128xf32>
    %10 = arith.addf %6, %9 : vector<8x128xf32>
    %c0_8 = arith.constant 0 : index
    %c0_9 = arith.constant 0 : index
    %11 = vector.load %arg6[%c0_8, %c0_9] : memref<8x128xf32, #tpu.memory_space<vmem>>, vector<8x128xf32>
    tpu.vector_store %arg6[%c0_8, %c0_9], %10 {strides = array<i32>} : memref<8x128xf32, #tpu.memory_space<vmem>>, vector<8x128xf32>,
    %c0_i32_10 = arith.constant 0 : i32
    %12 = arith.cmpi eq, %arg1, %c0_i32_10 : i32
    %13 = arith.extui %12 : i1 to i32
    %c0_i32_11 = arith.constant 0 : i32
    %14 = arith.cmpi ne, %13, %c0_i32_11 : i32
    scf.if %14 {
      %c0_12 = arith.constant 0 : index
      %c0_13 = arith.constant 0 : index
      %15 = vector.load %arg6[%c0_12, %c0_13] : memref<8x128xf32, #tpu.memory_space<vmem>>, vector<8x128xf32>
      %16 = vector.shape_cast %15 : vector<8x128xf32> to vector<1x8x128xf32>
      %cst = arith.constant dense<0.000000e+00> : vector<1xf32>
      %17 = vector.multi_reduction <add>, %16, %cst [1, 2] : vector<1x8x128xf32> to vector<1xf32>
      %18 = vector.shape_cast %17 : vector<1xf32> to vector<1x1x1xf32>
      %19 = vector.extract %18[0, 0, 0] : f32 from vector<1x1x1xf32>
      %20 = vector.broadcast %19 : f32 to vector<1x1xf32>
      %c0_14 = arith.constant 0 : index
      %c0_15 = arith.constant 0 : index
      %21 = vector.load %arg5[%c0_14, %c0_15] : memref<1x1xf32, #tpu.memory_space<vmem>>, vector<1x1xf32>
      tpu.vector_store %arg5[%c0_14, %c0_15], %20 {strides = array<i32>} : memref<1x1xf32, #tpu.memory_space<vmem>>, vector<1x1xf32>,
    } else {
    }
    return
  }
  func.func @transform_0(%arg0: i32, %arg1: i32) -> (i32, i32) {
    %c1_i32 = arith.constant 1 : i32
    %0 = arith.muli %arg0, %c1_i32 : i32
    %1 = arith.addi %0, %arg1 : i32
    %c0_i32 = arith.constant 0 : i32
    %c0_i32_0 = arith.constant 0 : i32
    return %1, %c0_i32 : i32, i32
  }
  func.func @transform_1(%arg0: i32, %arg1: i32) -> (i32, i32) {
    %c1_i32 = arith.constant 1 : i32
    %0 = arith.muli %arg0, %c1_i32 : i32
    %1 = arith.addi %0, %arg1 : i32
    %c0_i32 = arith.constant 0 : i32
    %c0_i32_0 = arith.constant 0 : i32
    return %1, %c0_i32 : i32, i32
  }
  func.func @transform_2(%arg0: i32, %arg1: i32) -> (i32, i32) {
    %c1_i32 = arith.constant 1 : i32
    %0 = arith.muli %arg0, %c1_i32 : i32
    %1 = arith.addi %0, %arg1 : i32
    %c0_i32 = arith.constant 0 : i32
    %c0_i32_0 = arith.constant 0 : i32
    return %1, %c0_i32 : i32, i32
  }
  func.func @transform_3(%arg0: i32, %arg1: i32) -> (i32, i32) {
    %c0_i32 = arith.constant 0 : i32
    %c0_i32_0 = arith.constant 0 : i32
    return %arg0, %c0_i32 : i32, i32
  }
}

</mosaic_0001>

<llo_original>
// kernel: tpu_custom_call.1
$region0: #{tpu_custom_call.1}
  #allocation0 [shape = 'u32[]', space=smem, size = 0x4, offset = 0x4, fixed_abs, tag = 'smem constant byte address 0x4 - core index']
  #allocation1 [shape = 'u32[144,128]{1,0:T(1,128)}', space=vmem, size = 0x12000, scoped, tag = 'internal scratch']
  #allocation2 [shape = 'f32[8,128]{1,0:T(8,128)}', space=vmem, size = 0x1000, scoped, tag = 'scratch operand']
  %s0 = inlined_call_operand.hbm [shape: f32[8,128], index: 0, kind: input, shape index: {}]
  %s1 = inlined_call_operand.hbm [shape: f32[8,128], index: 1, kind: input, shape index: {}]
  %s2 = inlined_call_operand.hbm [shape: f32[8,128], index: 2, kind: input, shape index: {}]
  %s3 = inlined_call_operand.hbm [shape: f32[1,1], index: 3, kind: output, shape index: {}]
  %s4 = sld [smem:[#allocation0]]
  $region42: #{tpu_custom_call.1} parent=0
    _
  %s6 = ssub.s32 1, %s4
  %s7 = scalar_select 0, %s6, %s4
  $region1: #{tpu_custom_call.1} parent=0
    #allocation3 [shape = 'u8[4096]{0}', space=vmem, size = 0x1000, scoped, tag = 'input window, operand 0, single buffered']
    #allocation4 [shape = 's32[1]{0}', space=sflag, size = 0x4, scoped, tag = 'scoped memory for tpu_custom_call.1']
    #allocation5 [shape = 's32[1]{0}', space=sflag, size = 0x4, scoped, tag = 'scoped memory for tpu_custom_call.1']
    #allocation6 [shape = 'u8[4096]{0}', space=vmem, size = 0x1000, scoped, tag = 'input window, operand 1, single buffered']
    #allocation7 [shape = 's32[1]{0}', space=sflag, size = 0x4, scoped, tag = 'scoped memory for tpu_custom_call.1']
    #allocation8 [shape = 'u8[4096]{0}', space=vmem, size = 0x1000, scoped, tag = 'input window, operand 2, single buffered']
    #allocation9 [shape = 'u8[512]{0}', space=vmem, size = 0x400, scoped, tag = 'output window, operand 0, single buffered']
    %8 = vsyncpa [#allocation4], 0
    %9 = vsyncpa [#allocation7], 0
    %10 = vsyncpa [#allocation5], 0
    // Predicated region
    $region2: #{tpu_custom_call.1} parent=1 // pred_check
      _
    $region3: #{tpu_custom_call.1} parent=1 // pred_check_branch
      %12 = sbr.rel (0) target = $region5
    $region4: #{tpu_custom_call.1} parent=1 // pred_region
      %s13 = sadd.s32 0, 0
      %s15 = ssub.s32 128, 128
      %16 = vsyncadd [#allocation4], %s15
      %s17 = smul.addr %s13, 128
      %s18 = scalar_lea.hbm %s0, %s17
      %s20 = sshll.u32 [#allocation3], 4
      %s21 = int_to_ptr.vmem [resolvable:$true] %s20
      %23 = dma.hbm_to_vmem [thread:$0]  %s18, 128, %s21, [#allocation4]
    $region5: #{tpu_custom_call.1} parent=1 // pred_fallthru
      _
    // Predicated region
    $region6: #{tpu_custom_call.1} parent=1 // pred_check
      _
    $region7: #{tpu_custom_call.1} parent=1 // pred_check_branch
      %25 = sbr.rel (0) target = $region9
    $region8: #{tpu_custom_call.1} parent=1 // pred_region
      %s26 = sadd.s32 0, 0
      %s28 = ssub.s32 128, 128
      %29 = vsyncadd [#allocation7], %s28
      %s30 = smul.addr %s26, 128
      %s31 = scalar_lea.hbm %s1, %s30
      %s33 = sshll.u32 [#allocation6], 4
      %s34 = int_to_ptr.vmem [resolvable:$true] %s33
      %36 = dma.hbm_to_vmem [thread:$0]  %s31, 128, %s34, [#allocation7]
    $region9: #{tpu_custom_call.1} parent=1 // pred_fallthru
      _
    // Predicated region
    $region10: #{tpu_custom_call.1} parent=1 // pred_check
      _
    $region11: #{tpu_custom_call.1} parent=1 // pred_check_branch
      %38 = sbr.rel (0) target = $region13
    $region12: #{tpu_custom_call.1} parent=1 // pred_region
      %s39 = sadd.s32 0, 0
      %s41 = ssub.s32 128, 128
      %42 = vsyncadd [#allocation7], %s41
      %s43 = smul.addr %s39, 128
      %s44 = scalar_lea.hbm %s2, %s43
      %s46 = sshll.u32 [#allocation8], 4
      %s47 = int_to_ptr.vmem [resolvable:$true] %s46
      %49 = dma.hbm_to_vmem [thread:$0]  %s44, 128, %s47, [#allocation7]
    $region13: #{tpu_custom_call.1} parent=1 // pred_fallthru
      _
    // Predicated region
    $region14: #{tpu_custom_call.1} parent=1 // pred_check
      _
    $region15: #{tpu_custom_call.1} parent=1 // pred_check_branch
      %51 = sbr.rel (0) target = $region17
    $region16: #{tpu_custom_call.1} parent=1 // pred_region
      %52 = dma.done [#allocation4], 128
    $region17: #{tpu_custom_call.1} parent=1 // pred_fallthru
      _
    // Predicated region
    $region18: #{tpu_custom_call.1} parent=1 // pred_check
      _
    $region19: #{tpu_custom_call.1} parent=1 // pred_check_branch
      %54 = sbr.rel (0) target = $region21
    $region20: #{tpu_custom_call.1} parent=1 // pred_region
      %55 = dma.done [#allocation7], 128
    $region21: #{tpu_custom_call.1} parent=1 // pred_fallthru
      _
    // Predicated region
    $region22: #{tpu_custom_call.1} parent=1 // pred_check
      _
    $region23: #{tpu_custom_call.1} parent=1 // pred_check_branch
      %57 = sbr.rel (0) target = $region25
    $region24: #{tpu_custom_call.1} parent=1 // pred_region
      %58 = dma.done [#allocation7], 128
    $region25: #{tpu_custom_call.1} parent=1 // pred_fallthru
      _
    %s59 = sadd.s32 0, 0
    %s60 = sadd.s32 0, 0
    %s61 = sadd.s32 0, 0
    %p62 = scmp.eq.s32.totalorder 0, 0
    // Predicated region
    $region26: #{tpu_custom_call.1} parent=1 // pred_check
      %p63 = pneg %p62
    $region27: #{tpu_custom_call.1} parent=1 // pred_check_branch
      %65 = sbr.rel (%p63) target = $region29
    $region28: #{tpu_custom_call.1} parent=1 // pred_region
      %66 = vst [vmem:[#allocation2] sm:$0xff] 0.0
    $region29: #{tpu_custom_call.1} parent=1 // pred_fallthru
      _
    %v67 = vld [vmem:[#allocation3] sm:$0xff]
    %v68 = vld [vmem:[#allocation6] sm:$0xff]
    %v69 = vld [vmem:[#allocation8] sm:$0xff]
    %v70 = vld [vmem:[#allocation2] sm:$0xff]
    %v71 = vsub.f32 %v67, %v68
    %v72 = vand.u32 2147483647, %v71
    %v73 = vmul.f32 %v72, %v69
    %v74 = vadd.f32 %v70, %v73
    %75 = vst [vmem:[#allocation2] sm:$0xff] %v74
    // Predicated region
    $region30: #{tpu_custom_call.1} parent=1 // pred_check
      %p76 = pneg %p62
    $region31: #{tpu_custom_call.1} parent=1 // pred_check_branch
      %78 = sbr.rel (%p76) target = $region33
    $region32: #{tpu_custom_call.1} parent=1 // pred_region
      %v79 = vld [vmem:[#allocation2] sm:$0xff]
      %80 = vadd.xlane.f32.xlu0 %v79
      %v81 = vpop.xlane.xlu0 %80
      %v82 = vrot.slane %v81, 4
      %v83 = vadd.f32 %v81, %v82
      %v84 = vrot.slane %v83, 2
      %v85 = vadd.f32 %v83, %v84
      %v86 = vrot.slane %v85, 1
      %v87 = vadd.f32 %v85, %v86
      %s88 = vtos %v87
      %v89 = vstv %s88
      %vm90 = vcmask 0
      %91 = vst.msk [vmem:[#allocation9] sm:$0x1] %vm90, %v89
    $region33: #{tpu_custom_call.1} parent=1 // pred_fallthru
      _
    // Predicated region
    $region34: #{tpu_custom_call.1} parent=1 // pred_check
      _
    $region35: #{tpu_custom_call.1} parent=1 // pred_check_branch
      %93 = sbr.rel (0) target = $region37
    $region36: #{tpu_custom_call.1} parent=1 // pred_region
      %s95 = ssub.s32 16, 16
      %96 = vsyncadd [#allocation5], %s95
      %s98 = sshll.u32 [#allocation9], 4
      %s99 = int_to_ptr.vmem [resolvable:$true] %s98
      %101 = dma.vmem_to_hbm [thread:$0]  %s99, 16, %s3, [#allocation5]
    $region37: #{tpu_custom_call.1} parent=1 // pred_fallthru
      _
    // Predicated region
    $region38: #{tpu_custom_call.1} parent=1 // pred_check
      _
    $region39: #{tpu_custom_call.1} parent=1 // pred_check_branch
      %103 = sbr.rel (0) target = $region41
    $region40: #{tpu_custom_call.1} parent=1 // pred_region
      %104 = dma.done [#allocation5], 16
    $region41: #{tpu_custom_call.1} parent=1 // pred_fallthru
      _
    %105 = vsyncpa [#allocation4], 1
    %106 = vsyncpa [#allocation7], 1
    %107 = vsyncpa [#allocation5], 1

</llo_original>
